<compile_context>
chip_gen: v6e
topology: v6e:2x2x1
jax: 0.10.0
libtpu: 0.0.40
codegen_flags: <defaults>
</compile_context>

<pallas_src>
import functools

import jax
import jax.numpy as jnp
from jax.experimental import pallas as pl
from jax.experimental.pallas import tpu as pltpu


def _round_up(x, m):
    return (x + m - 1) // m * m


def _moving_avg_kernel(x_ref, o_ref, xp_ref, *acc_refs, K, S, F, L, Lout, Q, R):
    """Fused edge-pad + K-tap moving average (+ stride-S subsample).

    x_ref : (NB, L, TC)     un-padded input block (auto-pipelined from HBM)
    o_ref : (NB, Lout, TC)  strided moving-average output block
    xp_ref: (NB, Lscr, TC)  padded slab, kept in the input dtype
    acc_refs: 0..2 f32 scratches (NB, U, TC) holding the aligned partial sums
    """
    NB, Lscr, TC = xp_ref.shape
    R8 = min(8, K)                 # number of misaligned combines (<= 8)
    U = L + R8 - 1                 # rows of each aligned partial sum
    f32 = jnp.float32

    # ---- 1. edge-replicated padded slab in VMEM (input dtype, fused pad) ----
    # rows [0, F) = x[0], rows [F, F+L) = x, rows [F+L, Lscr) = x[L-1]
    if F > 0:
        xp_ref[:, 0:F, :] = jnp.broadcast_to(x_ref[:, 0:1, :], (NB, F, TC))
    xp_ref[:, F:F + L, :] = x_ref[...]
    if Lscr > F + L:
        xp_ref[:, F + L:Lscr, :] = jnp.broadcast_to(
            x_ref[:, L - 1:L, :], (NB, Lscr - F - L, TC))

    # ---- 2. sublane-ALIGNED partial sums -> explicit f32 scratch ------------
    # acc_q   = sum of Q taps at offsets 0, 8, ..., 8(Q-1)      (acc_refs[0])
    # acc_q1  = acc_q + one more aligned tap at offset 8Q       (acc_refs[1])
    if Q > 0:
        acc = xp_ref[:, 0:U, :].astype(f32)
        for j in range(1, Q):
            acc = acc + xp_ref[:, 8 * j:8 * j + U, :].astype(f32)
        acc_refs[0][...] = acc
        if R > 0:
            acc_refs[1][...] = (acc_refs[0][...] +
                                xp_ref[:, 8 * Q:8 * Q + U, :].astype(f32))

    # ---- 3. <=8 misaligned combines; stride fused (only Lout rows touched) --
    # ms[t] = sum_{k<K} xp[S*t + k], k = 8j + r:
    #   r <  R -> acc_q1 (Q+1 aligned taps), r >= R -> acc_q (Q taps)
    def tap(ref, r, needs_cast):
        if S == 1:
            sl = ref[:, r:r + Lout, :]
        else:
            sl = ref[:, pl.ds(r, Lout, stride=S), :]
        return sl.astype(f32) if needs_cast else sl

    ms = None
    for r in range(R8):
        if Q == 0:                       # K < 8: taps come straight from xp
            part = tap(xp_ref, r, True)
        elif R > 0 and r < R:
            part = tap(acc_refs[1], r, False)
        else:
            part = tap(acc_refs[0], r, False)
        ms = part if ms is None else ms + part

    o_ref[...] = (ms * f32(1.0 / K)).astype(o_ref.dtype)


def _choose_channel_tile(C):
    # Lane axis: block must be a multiple of 128 or the full dim.
    if C % 128 == 0:
        for tc in (512, 384, 256, 128):
            if C % tc == 0:
                return tc
    return C


def _vmem_caps():
    """(block-budget bytes, reported VMEM capacity) — generation aware."""
    cap = None
    try:
        info = pltpu.get_tpu_info()
        cap = getattr(info, "vmem_capacity_bytes", None)
    except Exception:
        cap = None
    if not cap:
        cap = 64 * 1024 * 1024                     # conservative (v7x-sized)
    if cap <= 80 * 1024 * 1024:                    # v7x-class: 64 MiB per TC
        budget = min(44 * 1024 * 1024, int(cap * 0.70))
    else:                                          # v5e / v6e: 128 MiB
        budget = min(80 * 1024 * 1024, int(cap * 0.625))
    return budget, cap


def _block_vmem_bytes(NB, L, Lout, Lscr, U, TC, itemsize, n_acc):
    """Real per-step VMEM footprint: lane-padded, incl. scratch + 2x buffering."""
    lanes = _round_up(TC, 128)
    b = 0
    b += 2 * NB * _round_up(L, 8) * lanes * itemsize       # input block, double-buffered
    b += 2 * NB * _round_up(Lout, 8) * lanes * itemsize    # output block, double-buffered
    b += NB * Lscr * lanes * itemsize                      # padded slab (input dtype)
    b += n_acc * NB * _round_up(U, 8) * lanes * 4          # f32 aligned partial sums
    return b


def moving_avg(x, kernel_size, stride=1):
    """Pallas equivalent of moving_avg(kernel_size, stride).forward(x), x:[B,L,C]."""
    if isinstance(kernel_size, (list, tuple)) and len(kernel_size) == 1:
        kernel_size = kernel_size[0]
    K = int(kernel_size)
    S = int(stride)
    B, L, C = x.shape
    F = K - 1 - (K - 1) // 2          # front replication rows (PyTorch formula)
    Lp = L + K - 1                    # padded sequence length
    Lout = (Lp - K) // S + 1          # AvgPool1d output length

    # Aligned-tap decomposition bookkeeping (must match the kernel).
    R8 = min(8, K)
    Q, R = divmod(K, 8)
    U = L + R8 - 1
    n_taps = Q + (1 if R > 0 else 0)
    max_row = 8 * (n_taps - 1) + U - 1
    Lscr = _round_up(max(max_row + 1, F + L), 8)
    n_acc = (1 if Q > 0 else 0) + (1 if (Q > 0 and R > 0) else 0)

    itemsize = jnp.dtype(x.dtype).itemsize
    TC = _choose_channel_tile(C)
    budget, _cap = _vmem_caps()

    # Largest batch tile that fits the (lane-padded) VMEM budget.
    per1 = _block_vmem_bytes(1, L, Lout, Lscr, U, TC, itemsize, n_acc)
    NB = int(max(1, min(B, budget // max(per1, 1))))
    while B % NB:
        NB -= 1
    # Guarantee >=2 grid steps when possible: feeds both v7x TensorCores and
    # lets the auto-pipeline overlap input DMA / compute / output DMA.
    if (B // NB) * (C // TC) < 2 and B >= 2:
        NB = min(NB, B // 2)
        while B % NB:
            NB -= 1

    footprint = _block_vmem_bytes(NB, L, Lout, Lscr, U, TC, itemsize, n_acc)
    vmem_limit = int(max(budget, footprint + (4 << 20)))

    scratch = [pltpu.VMEM((NB, Lscr, TC), x.dtype)]
    for _ in range(n_acc):
        scratch.append(pltpu.VMEM((NB, U, TC), jnp.float32))

    kernel = functools.partial(_moving_avg_kernel,
                               K=K, S=S, F=F, L=L, Lout=Lout, Q=Q, R=R)
    grid = (B // NB, C // TC)
    return pl.pallas_call(
        kernel,
        out_shape=jax.ShapeDtypeStruct((B, Lout, C), x.dtype),
        grid_spec=pltpu.PrefetchScalarGridSpec(
            num_scalar_prefetch=0,
            grid=grid,
            in_specs=[pl.BlockSpec((NB, L, TC), lambda b, c: (b, 0, c))],
            out_specs=pl.BlockSpec((NB, Lout, TC), lambda b, c: (b, 0, c)),
            scratch_shapes=scratch),
        compiler_params=pltpu.CompilerParams(
            dimension_semantics=("parallel", "parallel"),
            vmem_limit_bytes=vmem_limit),
    )(x)


def _moving_avg_ref(x, kernel_size, stride=1):
    """Pure-JAX reference mirroring the PyTorch module (f32 accumulation)."""
    if isinstance(kernel_size, (list, tuple)) and len(kernel_size) == 1:
        kernel_size = kernel_size[0]
    K, S = int(kernel_size), int(stride)
    xf = x.astype(jnp.float32)
    front_rep = K - 1 - (K - 1) // 2
    end_rep = (K - 1) // 2
    parts = []
    if front_rep > 0:
        parts.append(jnp.repeat(xf[:, 0:1, :], front_rep, axis=1))
    parts.append(xf)
    if end_rep > 0:
        parts.append(jnp.repeat(xf[:, -1:, :], end_rep, axis=1))
    xp = jnp.concatenate(parts, axis=1)
    Lp = xp.shape[1]
    Lout = (Lp - K) // S + 1
    windows = jnp.stack([xp[:, t * S:t * S + K, :] for t in range(Lout)], axis=1)
    return windows.mean(axis=2)


if __name__ == "__main__":
    key = jax.random.PRNGKey(0)
    configs = [
        # (B, L, C, K, S, dtype)
        (2, 96, 8, 25, 1, jnp.float32),     # DLinear/Autoformer-style window
        (2, 96, 8, 16, 1, jnp.float32),     # K multiple of 8 (single aligned acc)
        (2, 16, 8, 6, 2, jnp.float32),      # K < 8 + strided pooling (fused stride)
        (2, 64, 128, 25, 1, jnp.bfloat16),  # lane-dense channels, bf16 slab
    ]
    for i, (B, L, C, K, S, dt) in enumerate(configs):
        key, sub = jax.random.split(key)
        x = jax.random.normal(sub, (B, L, C), dtype=jnp.float32).astype(dt)
        out = jax.block_until_ready(moving_avg(x, K, S))
        ref = _moving_avg_ref(x, K, S)
        assert out.shape == ref.shape, (i, out.shape, ref.shape)
        tol = 1e-5 if dt == jnp.float32 else 2e-2
        assert jnp.allclose(out.astype(jnp.float32), ref, atol=tol, rtol=tol), \
            f"mismatch, cfg {i}"
    print("KERNEL_OK")
</pallas_src>

<mosaic_0001>
module attributes {stable_mosaic.version = 11 : i64} {
  func.func @_moving_avg_kernel(%arg0: i32, %arg1: i32, %arg2: memref<1x96x8xf32, #tpu.memory_space<vmem>>, %arg3: memref<1x96x8xf32, #tpu.memory_space<vmem>>, %arg4: memref<1x128x8xf32, #tpu.memory_space<vmem>>, %arg5: memref<1x103x8xf32, #tpu.memory_space<vmem>>, %arg6: memref<1x103x8xf32, #tpu.memory_space<vmem>>) attributes {dimension_semantics = [#tpu.dimension_semantics<parallel>, #tpu.dimension_semantics<parallel>], iteration_bounds = array<i64: 2, 1>, scalar_prefetch = 0 : i64, scratch_operands = 3 : i64, tpu.core_type = #tpu.core_type<tc>, window_params = [{transform_indices = @transform_0, window_bounds = array<i64: 1, 96, 8>}, {transform_indices = @transform_1, window_bounds = array<i64: 1, 96, 8>}]} {
    %c0 = arith.constant 0 : index
    %c0_0 = arith.constant 0 : index
    %c0_1 = arith.constant 0 : index
    %0 = vector.load %arg2[%c0, %c0_0, %c0_1] : memref<1x96x8xf32, #tpu.memory_space<vmem>>, vector<1x1x8xf32>
    %1 = vector.shape_cast %0 : vector<1x1x8xf32> to vector<1x1x8xf32>
    %2 = vector.broadcast %1 : vector<1x1x8xf32> to vector<1x12x8xf32>
    %c0_2 = arith.constant 0 : index
    %c0_3 = arith.constant 0 : index
    %c0_4 = arith.constant 0 : index
    %3 = vector.load %arg4[%c0_2, %c0_3, %c0_4] : memref<1x128x8xf32, #tpu.memory_space<vmem>>, vector<1x12x8xf32>
    tpu.vector_store %arg4[%c0_2, %c0_3, %c0_4], %2 {strides = array<i32>} : memref<1x128x8xf32, #tpu.memory_space<vmem>>, vector<1x12x8xf32>,
    %c0_5 = arith.constant 0 : index
    %c0_6 = arith.constant 0 : index
    %c0_7 = arith.constant 0 : index
    %4 = vector.load %arg2[%c0_5, %c0_6, %c0_7] : memref<1x96x8xf32, #tpu.memory_space<vmem>>, vector<1x96x8xf32>
    %c0_8 = arith.constant 0 : index
    %c12 = arith.constant 12 : index
    %c0_9 = arith.constant 0 : index
    %5 = vector.load %arg4[%c0_8, %c12, %c0_9] : memref<1x128x8xf32, #tpu.memory_space<vmem>>, vector<1x96x8xf32>
    tpu.vector_store %arg4[%c0_8, %c12, %c0_9], %4 {strides = array<i32>} : memref<1x128x8xf32, #tpu.memory_space<vmem>>, vector<1x96x8xf32>,
    %c0_10 = arith.constant 0 : index
    %c95 = arith.constant 95 : index
    %c0_11 = arith.constant 0 : index
    %6 = vector.load %arg2[%c0_10, %c95, %c0_11] : memref<1x96x8xf32, #tpu.memory_space<vmem>>, vector<1x1x8xf32>
    %7 = vector.shape_cast %6 : vector<1x1x8xf32> to vector<1x1x8xf32>
    %8 = vector.broadcast %7 : vector<1x1x8xf32> to vector<1x20x8xf32>
    %c0_12 = arith.constant 0 : index
    %c108 = arith.constant 108 : index
    %c0_13 = arith.constant 0 : index
    %9 = vector.load %arg4[%c0_12, %c108, %c0_13] : memref<1x128x8xf32, #tpu.memory_space<vmem>>, vector<1x20x8xf32>
    tpu.vector_store %arg4[%c0_12, %c108, %c0_13], %8 {strides = array<i32>} : memref<1x128x8xf32, #tpu.memory_space<vmem>>, vector<1x20x8xf32>,
    %c0_14 = arith.constant 0 : index
    %c0_15 = arith.constant 0 : index
    %c0_16 = arith.constant 0 : index
    %10 = vector.load %arg4[%c0_14, %c0_15, %c0_16] : memref<1x128x8xf32, #tpu.memory_space<vmem>>, vector<1x103x8xf32>
    %c0_17 = arith.constant 0 : index
    %c8 = arith.constant 8 : index
    %c0_18 = arith.constant 0 : index
    %11 = vector.load %arg4[%c0_17, %c8, %c0_18] : memref<1x128x8xf32, #tpu.memory_space<vmem>>, vector<1x103x8xf32>
    %12 = arith.addf %10, %11 : vector<1x103x8xf32>
    %c0_19 = arith.constant 0 : index
    %c16 = arith.constant 16 : index
    %c0_20 = arith.constant 0 : index
    %13 = vector.load %arg4[%c0_19, %c16, %c0_20] : memref<1x128x8xf32, #tpu.memory_space<vmem>>, vector<1x103x8xf32>
    %14 = arith.addf %12, %13 : vector<1x103x8xf32>
    %c0_21 = arith.constant 0 : index
    %c0_22 = arith.constant 0 : index
    %c0_23 = arith.constant 0 : index
    %15 = vector.load %arg5[%c0_21, %c0_22, %c0_23] : memref<1x103x8xf32, #tpu.memory_space<vmem>>, vector<1x103x8xf32>
    tpu.vector_store %arg5[%c0_21, %c0_22, %c0_23], %14 {strides = array<i32>} : memref<1x103x8xf32, #tpu.memory_space<vmem>>, vector<1x103x8xf32>,
    %c0_24 = arith.constant 0 : index
    %c0_25 = arith.constant 0 : index
    %c0_26 = arith.constant 0 : index
    %16 = vector.load %arg5[%c0_24, %c0_25, %c0_26] : memref<1x103x8xf32, #tpu.memory_space<vmem>>, vector<1x103x8xf32>
    %c0_27 = arith.constant 0 : index
    %c24 = arith.constant 24 : index
    %c0_28 = arith.constant 0 : index
    %17 = vector.load %arg4[%c0_27, %c24, %c0_28] : memref<1x128x8xf32, #tpu.memory_space<vmem>>, vector<1x103x8xf32>
    %18 = arith.addf %16, %17 : vector<1x103x8xf32>
    %c0_29 = arith.constant 0 : index
    %c0_30 = arith.constant 0 : index
    %c0_31 = arith.constant 0 : index
    %19 = vector.load %arg6[%c0_29, %c0_30, %c0_31] : memref<1x103x8xf32, #tpu.memory_space<vmem>>, vector<1x103x8xf32>
    tpu.vector_store %arg6[%c0_29, %c0_30, %c0_31], %18 {strides = array<i32>} : memref<1x103x8xf32, #tpu.memory_space<vmem>>, vector<1x103x8xf32>,
    %c0_32 = arith.constant 0 : index
    %c0_33 = arith.constant 0 : index
    %c0_34 = arith.constant 0 : index
    %20 = vector.load %arg6[%c0_32, %c0_33, %c0_34] : memref<1x103x8xf32, #tpu.memory_space<vmem>>, vector<1x96x8xf32>
    %c0_35 = arith.constant 0 : index
    %c1 = arith.constant 1 : index
    %c0_36 = arith.constant 0 : index
    %21 = vector.load %arg5[%c0_35, %c1, %c0_36] : memref<1x103x8xf32, #tpu.memory_space<vmem>>, vector<1x96x8xf32>
    %22 = arith.addf %20, %21 : vector<1x96x8xf32>
    %c0_37 = arith.constant 0 : index
    %c2 = arith.constant 2 : index
    %c0_38 = arith.constant 0 : index
    %23 = vector.load %arg5[%c0_37, %c2, %c0_38] : memref<1x103x8xf32, #tpu.memory_space<vmem>>, vector<1x96x8xf32>
    %24 = arith.addf %22, %23 : vector<1x96x8xf32>
    %c0_39 = arith.constant 0 : index
    %c3 = arith.constant 3 : index
    %c0_40 = arith.constant 0 : index
    %25 = vector.load %arg5[%c0_39, %c3, %c0_40] : memref<1x103x8xf32, #tpu.memory_space<vmem>>, vector<1x96x8xf32>
    %26 = arith.addf %24, %25 : vector<1x96x8xf32>
    %c0_41 = arith.constant 0 : index
    %c4 = arith.constant 4 : index
    %c0_42 = arith.constant 0 : index
    %27 = vector.load %arg5[%c0_41, %c4, %c0_42] : memref<1x103x8xf32, #tpu.memory_space<vmem>>, vector<1x96x8xf32>
    %28 = arith.addf %26, %27 : vector<1x96x8xf32>
    %c0_43 = arith.constant 0 : index
    %c5 = arith.constant 5 : index
    %c0_44 = arith.constant 0 : index
    %29 = vector.load %arg5[%c0_43, %c5, %c0_44] : memref<1x103x8xf32, #tpu.memory_space<vmem>>, vector<1x96x8xf32>
    %30 = arith.addf %28, %29 : vector<1x96x8xf32>
    %c0_45 = arith.constant 0 : index
    %c6 = arith.constant 6 : index
    %c0_46 = arith.constant 0 : index
    %31 = vector.load %arg5[%c0_45, %c6, %c0_46] : memref<1x103x8xf32, #tpu.memory_space<vmem>>, vector<1x96x8xf32>
    %32 = arith.addf %30, %31 : vector<1x96x8xf32>
    %c0_47 = arith.constant 0 : index
    %c7 = arith.constant 7 : index
    %c0_48 = arith.constant 0 : index
    %33 = vector.load %arg5[%c0_47, %c7, %c0_48] : memref<1x103x8xf32, #tpu.memory_space<vmem>>, vector<1x96x8xf32>
    %34 = arith.addf %32, %33 : vector<1x96x8xf32>
    %cst = arith.constant 4.000000e-02 : f32
    %35 = vector.broadcast %cst : f32 to vector<1x96x8xf32>
    %36 = arith.mulf %34, %35 : vector<1x96x8xf32>
    %c0_49 = arith.constant 0 : index
    %c0_50 = arith.constant 0 : index
    %c0_51 = arith.constant 0 : index
    %37 = vector.load %arg3[%c0_49, %c0_50, %c0_51] : memref<1x96x8xf32, #tpu.memory_space<vmem>>, vector<1x96x8xf32>
    tpu.vector_store %arg3[%c0_49, %c0_50, %c0_51], %36 {strides = array<i32>} : memref<1x96x8xf32, #tpu.memory_space<vmem>>, vector<1x96x8xf32>,
    return
  }
  func.func @transform_0(%arg0: i32, %arg1: i32) -> (i32, i32, i32) {
    %c0_i32 = arith.constant 0 : i32
    %c0_i32_0 = arith.constant 0 : i32
    return %arg0, %c0_i32, %arg1 : i32, i32, i32
  }
  func.func @transform_1(%arg0: i32, %arg1: i32) -> (i32, i32, i32) {
    %c0_i32 = arith.constant 0 : i32
    %c0_i32_0 = arith.constant 0 : i32
    return %arg0, %c0_i32, %arg1 : i32, i32, i32
  }
}

</mosaic_0001>

<llo_original>
// kernel: tpu_custom_call.1
$region0: #{tpu_custom_call.1}
  #allocation0 [shape = 'u32[]', space=smem, size = 0x4, offset = 0x4, fixed_abs, tag = 'smem constant byte address 0x4 - core index']
  #allocation1 [shape = 'u32[144,128]{1,0:T(1,128)}', space=vmem, size = 0x12000, scoped, tag = 'internal scratch']
  #allocation2 [shape = 'f32[1,128,8]{2,1,0:T(8,128)}', space=vmem, size = 0x10000, scoped, tag = 'scratch operand']
  #allocation3 [shape = 'f32[1,103,8]{2,1,0:T(8,128)}', space=vmem, size = 0xd000, scoped, tag = 'scratch operand']
  #allocation4 [shape = 'f32[1,103,8]{2,1,0:T(8,128)}', space=vmem, size = 0xd000, scoped, tag = 'scratch operand']
  %s0 = inlined_call_operand.vmem [shape: f32[2,96,8], index: 0, kind: input, shape index: {}]
  %s1 = inlined_call_operand.vmem [shape: f32[2,96,8], index: 1, kind: output, shape index: {}]
  %s2 = sld [smem:[#allocation0]]
  $region37: #{tpu_custom_call.1} parent=0
    _
  %s4 = ssub.s32 1, %s2
  %s5 = scalar_select 0, %s4, %s2
  loop: start=0, step=1, limit=4
  $region2: #{tpu_custom_call.1} parent=0 // loop_pre_header
    _
  $region3: #{tpu_custom_call.1} parent=0 // loop_header
    %s7 = sphi 0, %s11
    %p8 = scmp.ge.s32.totalorder %s7, 4
    %s14 = sphi 0, %s26
    %s15 = sphi 0, %s22
    %s16 = sphi 0, %s14
    %s17 = sphi 0, %s15
    %s18 = sphi 0, %s16
    %s19 = sphi 0, %s17
    %s31 = sphi 0, %s33
    %s34 = sphi 0, %s31
    %s35 = sphi 0, %s34
    %s51 = sphi 0, %s35
    %s59 = sphi 0, %s61
    %s62 = sphi 0, %s59
    %s63 = sphi 0, %s62
    %s79 = sphi 0, %s63
  $region4: #{tpu_custom_call.1} parent=0 // loop_header_branch
    %10 = sbr.rel (%p8) target = $region8
  $region5: #{tpu_custom_call.1} parent=0 // loop_body
    %s12 = ssub.s32 %s7, 1
    %s13 = ssub.s32 %s7, 2
    %s20 = sadd.s32 1, %s15
    %p21 = scmp.ge.s32.totalorder %s20, 1
    %s22 = scalar_select %p21, 0, %s20
    %s23 = sadd.s32 1, %s14
    %s24 = scalar_select %p21, %s23, %s14
    %p25 = scmp.ge.s32.totalorder %s24, 2
    %s26 = scalar_select %p25, 0, %s24
    %s27 = ssub.s32 %s14, %s26
    %s28 = ssub.s32 %s15, %s22
    %s29 = sor.u32 %s27, %s28
    %p30 = scmp.eq.s32.totalorder %s29, 0
    %s32 = sadd.s32 %s31, 1
    %s33 = scalar_select %p30, %s31, %s32
    %p36 = pneg %p30
    %p37 = scmp.eq.s32.totalorder %s7, 1
    %p38 = por %p36, %p37
    %p39 = scmp.ne.s32.totalorder %s31, %s34
    %p40 = scmp.eq.s32.totalorder %s7, 0
    %p41 = por %p39, %p40
    %p42 = scmp.ne.s32.totalorder %s31, %s34
    %p43 = scmp.eq.s32.totalorder %s12, 1
    %p44 = por %p42, %p43
    %p45 = scmp.ne.s32.totalorder %s34, %s35
    %p46 = scmp.eq.s32.totalorder %s12, 0
    %p47 = por %p45, %p46
    %p48 = scmp.ne.s32.totalorder %s34, %s35
    %p49 = scmp.eq.s32.totalorder %s13, 1
    %p50 = por %p48, %p49
    %p52 = scmp.ne.s32.totalorder %s35, %s51
    %p53 = scmp.eq.s32.totalorder %s13, 0
    %p54 = por %p52, %p53
    %s55 = ssub.s32 %s14, %s26
    %s56 = ssub.s32 %s15, %s22
    %s57 = sor.u32 %s55, %s56
    %p58 = scmp.eq.s32.totalorder %s57, 0
    %s60 = sadd.s32 %s59, 1
    %s61 = scalar_select %p58, %s59, %s60
    %p64 = pneg %p58
    %p65 = scmp.eq.s32.totalorder %s7, 1
    %p66 = por %p64, %p65
    %p67 = scmp.ne.s32.totalorder %s59, %s62
    %p68 = scmp.eq.s32.totalorder %s7, 0
    %p69 = por %p67, %p68
    %p70 = scmp.ne.s32.totalorder %s59, %s62
    %p71 = scmp.eq.s32.totalorder %s12, 1
    %p72 = por %p70, %p71
    %p73 = scmp.ne.s32.totalorder %s62, %s63
    %p74 = scmp.eq.s32.totalorder %s12, 0
    %p75 = por %p73, %p74
    %p76 = scmp.ne.s32.totalorder %s62, %s63
    %p77 = scmp.eq.s32.totalorder %s13, 1
    %p78 = por %p76, %p77
    %p80 = scmp.ne.s32.totalorder %s63, %s79
    %p81 = scmp.eq.s32.totalorder %s13, 0
    %p82 = por %p80, %p81
    %p83 = scmp.le.s32.totalorder 1, %s7
    %p84 = scmp.lt.s32.totalorder %s7, 3
    %p85 = pnand %p83, %p84
    %p86 = pneg %p85
    // Predicated region
    $region9: #{tpu_custom_call.1} parent=5 // pred_check
      _
    $region10: #{tpu_custom_call.1} parent=5 // pred_check_branch
      %88 = sbr.rel (%p85) target = $region12
    $region11: #{tpu_custom_call.1} parent=5 // pred_region
      %s89 = ssub.s32 %s7, 1
    $region12: #{tpu_custom_call.1} parent=5 // pred_fallthru
      _
    %p90 = scmp.lt.s32.totalorder %s7, 2
    // Predicated region
    $region13: #{tpu_custom_call.1} parent=5 // pred_check
      %p91 = pneg %p90
    $region14: #{tpu_custom_call.1} parent=5 // pred_check_branch
      %93 = sbr.rel (%p91) target = $region16
    $region15: #{tpu_custom_call.1} parent=5 // pred_region
      // Predicated region
      $region17: #{tpu_custom_call.1} parent=15 // pred_check
        %p94 = pneg %p41
      $region18: #{tpu_custom_call.1} parent=15 // pred_check_branch
        %96 = sbr.rel (%p94) target = $region20
      $region19: #{tpu_custom_call.1} parent=15 // pred_region
        %p97 = scmp.lt.s32.totalorder %s14, 1
        %s98 = scalar_select %p97, %s14, 1
        %p99 = scmp.lt.s32.totalorder %s15, 0
        %s100 = scalar_select %p99, %s15, 0
        %s101 = smul.addr %s98, 12
        %s102 = sadd.s32 %s100, %s101
        %s103 = smul.addr %s102, 8
        %s104 = scalar_lea.vmem %s0, %s103
      $region20: #{tpu_custom_call.1} parent=15 // pred_fallthru
        _
    $region16: #{tpu_custom_call.1} parent=5 // pred_fallthru
      _
    %p105 = scmp.le.s32.totalorder 1, %s7
    %p106 = scmp.lt.s32.totalorder %s7, 3
    %p107 = pnand %p105, %p106
    %p108 = pneg %p107
    // Predicated region
    $region21: #{tpu_custom_call.1} parent=5 // pred_check
      _
    $region22: #{tpu_custom_call.1} parent=5 // pred_check_branch
      %110 = sbr.rel (%p107) target = $region24
    $region23: #{tpu_custom_call.1} parent=5 // pred_region
      %s111 = ssub.s32 %s7, 1
      %p112 = scmp.lt.s32.totalorder %s16, 1
      %s113 = scalar_select %p112, %s16, 1
      %p114 = scmp.lt.s32.totalorder %s17, 0
      %s115 = scalar_select %p114, %s17, 0
      %s116 = smul.addr %s113, 12
      %s117 = sadd.s32 %s115, %s116
      %s118 = smul.addr %s117, 8
      %s119 = scalar_lea.vmem %s0, %s118
      %p120 = pneg %p47
      %p121 = pneg %p44
      %p122 = pneg %p75
      %p123 = pneg %p72
      %p124 = scmp.lt.s32.totalorder %s16, 1
      %s125 = scalar_select %p124, %s16, 1
      %p126 = scmp.lt.s32.totalorder %s17, 0
      %s127 = scalar_select %p126, %s17, 0
      %s128 = smul.addr %s125, 12
      %s129 = sadd.s32 %s127, %s128
      %s130 = smul.addr %s129, 8
      %s131 = scalar_lea.vmem %s1, %s130
      %p132 = scmp.lt.s32.totalorder %s16, 1
      %s133 = scalar_select %p132, %s16, 1
      %p134 = scmp.lt.s32.totalorder %s17, 0
      %s135 = scalar_select %p134, %s17, 0
      %s136 = smul.addr %s133, 12
      %s137 = sadd.s32 %s135, %s136
      %s138 = smul.addr %s137, 8
      %s139 = scalar_lea.vmem %s0, %s138
      %p140 = scmp.lt.s32.totalorder %s16, 1
      %s141 = scalar_select %p140, %s16, 1
      %p142 = scmp.lt.s32.totalorder %s17, 0
      %s143 = scalar_select %p142, %s17, 0
      %s144 = smul.addr %s141, 12
      %s145 = sadd.s32 %s143, %s144
      %s146 = smul.addr %s145, 8
      %s147 = scalar_lea.vmem %s1, %s146
      %v148 = vld [vmem:[%s139] sm:$0x1]
      %v149 = vlaneseq
      %v150 = vshrl.u32 %v149, 7
      %v151 = vsub.s32 0, %v150
      %v152 = vrot.slane %v148, %v151
      %vm153 = vcmask 64512
      %154 = vst.msk [vmem:[#allocation2] sm:$0xff] %vm153, %v152
      %vm155 = vcmask 60416
      %156 = vst.msk [vmem:[#allocation2 + $0x8] sm:$0xf] %vm155, %v152
      %v157 = vld [vmem:[%s139] sm:$0xff]
      %v158 = vld [vmem:[%s139 + $0x8] sm:$0xff]
      %v159 = vld [vmem:[%s139 + $0x10] sm:$0xff]
      %v160 = vld [vmem:[%s139 + $0x18] sm:$0xff]
      %v161 = vld [vmem:[%s139 + $0x20] sm:$0xff]
      %v162 = vld [vmem:[%s139 + $0x28] sm:$0xff]
      %v163 = vld [vmem:[%s139 + $0x30] sm:$0xff]
      %v164 = vld [vmem:[%s139 + $0x38] sm:$0xff]
      %v165 = vld [vmem:[%s139 + $0x40] sm:$0xff]
      %v166 = vld [vmem:[%s139 + $0x48] sm:$0xff]
      %v167 = vld [vmem:[%s139 + $0x50] sm:$0xff]
      %v168 = vld [vmem:[%s139 + $0x58] sm:$0xff]
      %169 = vst.msk [vmem:[#allocation2 + $0xc] sm:$0xff] %vm153, %v157
      %170 = vst.msk [vmem:[#allocation2 + $0x14] sm:$0xff] %vm153, %v158
      %171 = vst.msk [vmem:[#allocation2 + $0x1c] sm:$0xff] %vm153, %v159
      %172 = vst.msk [vmem:[#allocation2 + $0x24] sm:$0xff] %vm153, %v160
      %173 = vst.msk [vmem:[#allocation2 + $0x2c] sm:$0xff] %vm153, %v161
      %174 = vst.msk [vmem:[#allocation2 + $0x34] sm:$0xff] %vm153, %v162
      %175 = vst.msk [vmem:[#allocation2 + $0x3c] sm:$0xff] %vm153, %v163
      %176 = vst.msk [vmem:[#allocation2 + $0x44] sm:$0xff] %vm153, %v164
      %177 = vst.msk [vmem:[#allocation2 + $0x4c] sm:$0xff] %vm153, %v165
      %178 = vst.msk [vmem:[#allocation2 + $0x54] sm:$0xff] %vm153, %v166
      %179 = vst.msk [vmem:[#allocation2 + $0x5c] sm:$0xff] %vm153, %v167
      %180 = vst.msk [vmem:[#allocation2 + $0x64] sm:$0xff] %vm153, %v168
      %v181 = vld [vmem:[%s139 + $0x5f] sm:$0x1]
      %v182 = vlaneseq
      %v183 = vshrl.u32 %v182, 7
      %v184 = vsub.s32 0, %v183
      %v185 = vrot.slane %v181, %v184
      %186 = vst.msk [vmem:[#allocation2 + $0x6c] sm:$0xff] %vm153, %v185
      %187 = vst.msk [vmem:[#allocation2 + $0x74] sm:$0xff] %vm153, %v185
      %188 = vst.msk [vmem:[#allocation2 + $0x7c] sm:$0xf] %vm155, %v185
      %v189 = vld [vmem:[#allocation2] sm:$0xff]
      %v190 = vld [vmem:[#allocation2 + $0x8] sm:$0xff]
      %v191 = vld [vmem:[#allocation2 + $0x10] sm:$0xff]
      %v192 = vld [vmem:[#allocation2 + $0x18] sm:$0xff]
      %v193 = vld [vmem:[#allocation2 + $0x20] sm:$0xff]
      %v194 = vld [vmem:[#allocation2 + $0x28] sm:$0xff]
      %v195 = vld [vmem:[#allocation2 + $0x30] sm:$0xff]
      %v196 = vld [vmem:[#allocation2 + $0x38] sm:$0xff]
      %v197 = vld [vmem:[#allocation2 + $0x40] sm:$0xff]
      %v198 = vld [vmem:[#allocation2 + $0x48] sm:$0xff]
      %v199 = vld [vmem:[#allocation2 + $0x50] sm:$0xff]
      %v200 = vld [vmem:[#allocation2 + $0x58] sm:$0xff]
      %v201 = vld [vmem:[#allocation2 + $0x60] sm:$0x7f]
      %v202 = vld [vmem:[#allocation2 + $0x60] sm:$0xff]
      %v203 = vld [vmem:[#allocation2 + $0x68] sm:$0x7f]
      %v204 = vadd.f32 %v189, %v190
      %v205 = vadd.f32 %v190, %v191
      %v206 = vadd.f32 %v191, %v192
      %v207 = vadd.f32 %v192, %v193
      %v208 = vadd.f32 %v193, %v194
      %v209 = vadd.f32 %v194, %v195
      %v210 = vadd.f32 %v195, %v196
      %v211 = vadd.f32 %v196, %v197
      %v212 = vadd.f32 %v197, %v198
      %v213 = vadd.f32 %v198, %v199
      %v214 = vadd.f32 %v199, %v200
      %v215 = vadd.f32 %v200, %v202
      %v216 = vadd.f32 %v201, %v203
      %v217 = vld [vmem:[#allocation2 + $0x68] sm:$0xff]
      %v218 = vld [vmem:[#allocation2 + $0x70] sm:$0x7f]
      %v219 = vadd.f32 %v204, %v191
      %v220 = vadd.f32 %v205, %v192
      %v221 = vadd.f32 %v206, %v193
      %v222 = vadd.f32 %v207, %v194
      %v223 = vadd.f32 %v208, %v195
      %v224 = vadd.f32 %v209, %v196
      %v225 = vadd.f32 %v210, %v197
      %v226 = vadd.f32 %v211, %v198
      %v227 = vadd.f32 %v212, %v199
      %v228 = vadd.f32 %v213, %v200
      %v229 = vadd.f32 %v214, %v202
      %v230 = vadd.f32 %v215, %v217
      %v231 = vadd.f32 %v216, %v218
      %232 = vst.msk [vmem:[#allocation3] sm:$0xff] %vm153, %v219
      %233 = vst.msk [vmem:[#allocation3 + $0x8] sm:$0xff] %vm153, %v220
      %234 = vst.msk [vmem:[#allocation3 + $0x10] sm:$0xff] %vm153, %v221
      %235 = vst.msk [vmem:[#allocation3 + $0x18] sm:$0xff] %vm153, %v222
      %236 = vst.msk [vmem:[#allocation3 + $0x20] sm:$0xff] %vm153, %v223
      %237 = vst.msk [vmem:[#allocation3 + $0x28] sm:$0xff] %vm153, %v224
      %238 = vst.msk [vmem:[#allocation3 + $0x30] sm:$0xff] %vm153, %v225
      %239 = vst.msk [vmem:[#allocation3 + $0x38] sm:$0xff] %vm153, %v226
      %240 = vst.msk [vmem:[#allocation3 + $0x40] sm:$0xff] %vm153, %v227
      %241 = vst.msk [vmem:[#allocation3 + $0x48] sm:$0xff] %vm153, %v228
      %242 = vst.msk [vmem:[#allocation3 + $0x50] sm:$0xff] %vm153, %v229
      %243 = vst.msk [vmem:[#allocation3 + $0x58] sm:$0xff] %vm153, %v230
      %vm244 = vcmask 63488
      %245 = vst.msk [vmem:[#allocation3 + $0x60] sm:$0x7f] %vm244, %v231
      %v246 = vld [vmem:[#allocation3] sm:$0xff]
      %v247 = vld [vmem:[#allocation3 + $0x8] sm:$0xff]
      %v248 = vld [vmem:[#allocation3 + $0x10] sm:$0xff]
      %v249 = vld [vmem:[#allocation3 + $0x18] sm:$0xff]
      %v250 = vld [vmem:[#allocation3 + $0x20] sm:$0xff]
      %v251 = vld [vmem:[#allocation3 + $0x28] sm:$0xff]
      %v252 = vld [vmem:[#allocation3 + $0x30] sm:$0xff]
      %v253 = vld [vmem:[#allocation3 + $0x38] sm:$0xff]
      %v254 = vld [vmem:[#allocation3 + $0x40] sm:$0xff]
      %v255 = vld [vmem:[#allocation3 + $0x48] sm:$0xff]
      %v256 = vld [vmem:[#allocation3 + $0x50] sm:$0xff]
      %v257 = vld [vmem:[#allocation3 + $0x58] sm:$0xff]
      %v258 = vld [vmem:[#allocation3 + $0x60] sm:$0x7f]
      %v259 = vld [vmem:[#allocation2 + $0x18] sm:$0xff]
      %v260 = vld [vmem:[#allocation2 + $0x20] sm:$0xff]
      %v261 = vld [vmem:[#allocation2 + $0x28] sm:$0xff]
      %v262 = vld [vmem:[#allocation2 + $0x30] sm:$0xff]
      %v263 = vld [vmem:[#allocation2 + $0x38] sm:$0xff]
      %v264 = vld [vmem:[#allocation2 + $0x40] sm:$0xff]
      %v265 = vld [vmem:[#allocation2 + $0x48] sm:$0xff]
      %v266 = vld [vmem:[#allocation2 + $0x50] sm:$0xff]
      %v267 = vld [vmem:[#allocation2 + $0x58] sm:$0xff]
      %v268 = vld [vmem:[#allocation2 + $0x60] sm:$0xff]
      %v269 = vld [vmem:[#allocation2 + $0x68] sm:$0xff]
      %v270 = vld [vmem:[#allocation2 + $0x70] sm:$0xff]
      %v271 = vld [vmem:[#allocation2 + $0x78] sm:$0x7f]
      %v272 = vadd.f32 %v246, %v259
      %v273 = vadd.f32 %v247, %v260
      %v274 = vadd.f32 %v248, %v261
      %v275 = vadd.f32 %v249, %v262
      %v276 = vadd.f32 %v250, %v263
      %v277 = vadd.f32 %v251, %v264
      %v278 = vadd.f32 %v252, %v265
      %v279 = vadd.f32 %v253, %v266
      %v280 = vadd.f32 %v254, %v267
      %v281 = vadd.f32 %v255, %v268
      %v282 = vadd.f32 %v256, %v269
      %v283 = vadd.f32 %v257, %v270
      %v284 = vadd.f32 %v258, %v271
      %285 = vst.msk [vmem:[#allocation4] sm:$0xff] %vm153, %v272
      %286 = vst.msk [vmem:[#allocation4 + $0x8] sm:$0xff] %vm153, %v273
      %287 = vst.msk [vmem:[#allocation4 + $0x10] sm:$0xff] %vm153, %v274
      %288 = vst.msk [vmem:[#allocation4 + $0x18] sm:$0xff] %vm153, %v275
      %289 = vst.msk [vmem:[#allocation4 + $0x20] sm:$0xff] %vm153, %v276
      %290 = vst.msk [vmem:[#allocation4 + $0x28] sm:$0xff] %vm153, %v277
      %291 = vst.msk [vmem:[#allocation4 + $0x30] sm:$0xff] %vm153, %v278
      %292 = vst.msk [vmem:[#allocation4 + $0x38] sm:$0xff] %vm153, %v279
      %293 = vst.msk [vmem:[#allocation4 + $0x40] sm:$0xff] %vm153, %v280
      %294 = vst.msk [vmem:[#allocation4 + $0x48] sm:$0xff] %vm153, %v281
      %295 = vst.msk [vmem:[#allocation4 + $0x50] sm:$0xff] %vm153, %v282
      %296 = vst.msk [vmem:[#allocation4 + $0x58] sm:$0xff] %vm153, %v283
      %297 = vst.msk [vmem:[#allocation4 + $0x60] sm:$0x7f] %vm244, %v284
      %v298 = vld [vmem:[#allocation4] sm:$0xff]
      %v299 = vld [vmem:[#allocation4 + $0x8] sm:$0xff]
      %v300 = vld [vmem:[#allocation4 + $0x10] sm:$0xff]
      %v301 = vld [vmem:[#allocation4 + $0x18] sm:$0xff]
      %v302 = vld [vmem:[#allocation4 + $0x20] sm:$0xff]
      %v303 = vld [vmem:[#allocation4 + $0x28] sm:$0xff]
      %v304 = vld [vmem:[#allocation4 + $0x30] sm:$0xff]
      %v305 = vld [vmem:[#allocation4 + $0x38] sm:$0xff]
      %v306 = vld [vmem:[#allocation4 + $0x40] sm:$0xff]
      %v307 = vld [vmem:[#allocation4 + $0x48] sm:$0xff]
      %v308 = vld [vmem:[#allocation4 + $0x50] sm:$0xff]
      %v309 = vld [vmem:[#allocation4 + $0x58] sm:$0xff]
      %v310 = vld [vmem:[#allocation3 + $0x1] sm:$0xff]
      %v311 = vld [vmem:[#allocation3 + $0x9] sm:$0xff]
      %v312 = vld [vmem:[#allocation3 + $0x11] sm:$0xff]
      %v313 = vld [vmem:[#allocation3 + $0x19] sm:$0xff]
      %v314 = vld [vmem:[#allocation3 + $0x21] sm:$0xff]
      %v315 = vld [vmem:[#allocation3 + $0x29] sm:$0xff]
      %v316 = vld [vmem:[#allocation3 + $0x31] sm:$0xff]
      %v317 = vld [vmem:[#allocation3 + $0x39] sm:$0xff]
      %v318 = vld [vmem:[#allocation3 + $0x41] sm:$0xff]
      %v319 = vld [vmem:[#allocation3 + $0x49] sm:$0xff]
      %v320 = vld [vmem:[#allocation3 + $0x51] sm:$0xff]
      %v321 = vld [vmem:[#allocation3 + $0x59] sm:$0xff]
      %v322 = vadd.f32 %v298, %v310
      %v323 = vadd.f32 %v299, %v311
      %v324 = vadd.f32 %v300, %v312
      %v325 = vadd.f32 %v301, %v313
      %v326 = vadd.f32 %v302, %v314
      %v327 = vadd.f32 %v303, %v315
      %v328 = vadd.f32 %v304, %v316
      %v329 = vadd.f32 %v305, %v317
      %v330 = vadd.f32 %v306, %v318
      %v331 = vadd.f32 %v307, %v319
      %v332 = vadd.f32 %v308, %v320
      %v333 = vadd.f32 %v309, %v321
      %v334 = vld [vmem:[#allocation3 + $0x2] sm:$0xff]
      %v335 = vld [vmem:[#allocation3 + $0xa] sm:$0xff]
      %v336 = vld [vmem:[#allocation3 + $0x12] sm:$0xff]
      %v337 = vld [vmem:[#allocation3 + $0x1a] sm:$0xff]
      %v338 = vld [vmem:[#allocation3 + $0x22] sm:$0xff]
      %v339 = vld [vmem:[#allocation3 + $0x2a] sm:$0xff]
      %v340 = vld [vmem:[#allocation3 + $0x32] sm:$0xff]
      %v341 = vld [vmem:[#allocation3 + $0x3a] sm:$0xff]
      %v342 = vld [vmem:[#allocation3 + $0x42] sm:$0xff]
      %v343 = vld [vmem:[#allocation3 + $0x4a] sm:$0xff]
      %v344 = vld [vmem:[#allocation3 + $0x52] sm:$0xff]
      %v345 = vld [vmem:[#allocation3 + $0x5a] sm:$0xff]
      %v346 = vadd.f32 %v322, %v334
      %v347 = vadd.f32 %v323, %v335
      %v348 = vadd.f32 %v324, %v336
      %v349 = vadd.f32 %v325, %v337
      %v350 = vadd.f32 %v326, %v338
      %v351 = vadd.f32 %v327, %v339
      %v352 = vadd.f32 %v328, %v340
      %v353 = vadd.f32 %v329, %v341
      %v354 = vadd.f32 %v330, %v342
      %v355 = vadd.f32 %v331, %v343
      %v356 = vadd.f32 %v332, %v344
      %v357 = vadd.f32 %v333, %v345
      %v358 = vld [vmem:[#allocation3 + $0x3] sm:$0xff]
      %v359 = vld [vmem:[#allocation3 + $0xb] sm:$0xff]
      %v360 = vld [vmem:[#allocation3 + $0x13] sm:$0xff]
      %v361 = vld [vmem:[#allocation3 + $0x1b] sm:$0xff]
      %v362 = vld [vmem:[#allocation3 + $0x23] sm:$0xff]
      %v363 = vld [vmem:[#allocation3 + $0x2b] sm:$0xff]
      %v364 = vld [vmem:[#allocation3 + $0x33] sm:$0xff]
      %v365 = vld [vmem:[#allocation3 + $0x3b] sm:$0xff]
      %v366 = vld [vmem:[#allocation3 + $0x43] sm:$0xff]
      %v367 = vld [vmem:[#allocation3 + $0x4b] sm:$0xff]
      %v368 = vld [vmem:[#allocation3 + $0x53] sm:$0xff]
      %v369 = vld [vmem:[#allocation3 + $0x5b] sm:$0xff]
      %v370 = vadd.f32 %v346, %v358
      %v371 = vadd.f32 %v347, %v359
      %v372 = vadd.f32 %v348, %v360
      %v373 = vadd.f32 %v349, %v361
      %v374 = vadd.f32 %v350, %v362
      %v375 = vadd.f32 %v351, %v363
      %v376 = vadd.f32 %v352, %v364
      %v377 = vadd.f32 %v353, %v365
      %v378 = vadd.f32 %v354, %v366
      %v379 = vadd.f32 %v355, %v367
      %v380 = vadd.f32 %v356, %v368
      %v381 = vadd.f32 %v357, %v369
      %v382 = vld [vmem:[#allocation3 + $0x4] sm:$0xff]
      %v383 = vld [vmem:[#allocation3 + $0xc] sm:$0xff]
      %v384 = vld [vmem:[#allocation3 + $0x14] sm:$0xff]
      %v385 = vld [vmem:[#allocation3 + $0x1c] sm:$0xff]
      %v386 = vld [vmem:[#allocation3 + $0x24] sm:$0xff]
      %v387 = vld [vmem:[#allocation3 + $0x2c] sm:$0xff]
      %v388 = vld [vmem:[#allocation3 + $0x34] sm:$0xff]
      %v389 = vld [vmem:[#allocation3 + $0x3c] sm:$0xff]
      %v390 = vld [vmem:[#allocation3 + $0x44] sm:$0xff]
      %v391 = vld [vmem:[#allocation3 + $0x4c] sm:$0xff]
      %v392 = vld [vmem:[#allocation3 + $0x54] sm:$0xff]
      %v393 = vld [vmem:[#allocation3 + $0x5c] sm:$0xff]
      %v394 = vadd.f32 %v370, %v382
      %v395 = vadd.f32 %v371, %v383
      %v396 = vadd.f32 %v372, %v384
      %v397 = vadd.f32 %v373, %v385
      %v398 = vadd.f32 %v374, %v386
      %v399 = vadd.f32 %v375, %v387
      %v400 = vadd.f32 %v376, %v388
      %v401 = vadd.f32 %v377, %v389
      %v402 = vadd.f32 %v378, %v390
      %v403 = vadd.f32 %v379, %v391
      %v404 = vadd.f32 %v380, %v392
      %v405 = vadd.f32 %v381, %v393
      %v406 = vld [vmem:[#allocation3 + $0x5] sm:$0xff]
      %v407 = vld [vmem:[#allocation3 + $0xd] sm:$0xff]
      %v408 = vld [vmem:[#allocation3 + $0x15] sm:$0xff]
      %v409 = vld [vmem:[#allocation3 + $0x1d] sm:$0xff]
      %v410 = vld [vmem:[#allocation3 + $0x25] sm:$0xff]
      %v411 = vld [vmem:[#allocation3 + $0x2d] sm:$0xff]
      %v412 = vld [vmem:[#allocation3 + $0x35] sm:$0xff]
      %v413 = vld [vmem:[#allocation3 + $0x3d] sm:$0xff]
      %v414 = vld [vmem:[#allocation3 + $0x45] sm:$0xff]
      %v415 = vld [vmem:[#allocation3 + $0x4d] sm:$0xff]
      %v416 = vld [vmem:[#allocation3 + $0x55] sm:$0xff]
      %v417 = vld [vmem:[#allocation3 + $0x5d] sm:$0xff]
      %v418 = vadd.f32 %v394, %v406
      %v419 = vadd.f32 %v395, %v407
      %v420 = vadd.f32 %v396, %v408
      %v421 = vadd.f32 %v397, %v409
      %v422 = vadd.f32 %v398, %v410
      %v423 = vadd.f32 %v399, %v411
      %v424 = vadd.f32 %v400, %v412
      %v425 = vadd.f32 %v401, %v413
      %v426 = vadd.f32 %v402, %v414
      %v427 = vadd.f32 %v403, %v415
      %v428 = vadd.f32 %v404, %v416
      %v429 = vadd.f32 %v405, %v417
      %v430 = vld [vmem:[#allocation3 + $0x6] sm:$0xff]
      %v431 = vld [vmem:[#allocation3 + $0xe] sm:$0xff]
      %v432 = vld [vmem:[#allocation3 + $0x16] sm:$0xff]
      %v433 = vld [vmem:[#allocation3 + $0x1e] sm:$0xff]
      %v434 = vld [vmem:[#allocation3 + $0x26] sm:$0xff]
      %v435 = vld [vmem:[#allocation3 + $0x2e] sm:$0xff]
      %v436 = vld [vmem:[#allocation3 + $0x36] sm:$0xff]
      %v437 = vld [vmem:[#allocation3 + $0x3e] sm:$0xff]
      %v438 = vld [vmem:[#allocation3 + $0x46] sm:$0xff]
      %v439 = vld [vmem:[#allocation3 + $0x4e] sm:$0xff]
      %v440 = vld [vmem:[#allocation3 + $0x56] sm:$0xff]
      %v441 = vld [vmem:[#allocation3 + $0x5e] sm:$0xff]
      %v442 = vadd.f32 %v418, %v430
      %v443 = vadd.f32 %v419, %v431
      %v444 = vadd.f32 %v420, %v432
      %v445 = vadd.f32 %v421, %v433
      %v446 = vadd.f32 %v422, %v434
      %v447 = vadd.f32 %v423, %v435
      %v448 = vadd.f32 %v424, %v436
      %v449 = vadd.f32 %v425, %v437
      %v450 = vadd.f32 %v426, %v438
      %v451 = vadd.f32 %v427, %v439
      %v452 = vadd.f32 %v428, %v440
      %v453 = vadd.f32 %v429, %v441
      %v454 = vld [vmem:[#allocation3 + $0x7] sm:$0xff]
      %v455 = vld [vmem:[#allocation3 + $0xf] sm:$0xff]
      %v456 = vld [vmem:[#allocation3 + $0x17] sm:$0xff]
      %v457 = vld [vmem:[#allocation3 + $0x1f] sm:$0xff]
      %v458 = vld [vmem:[#allocation3 + $0x27] sm:$0xff]
      %v459 = vld [vmem:[#allocation3 + $0x2f] sm:$0xff]
      %v460 = vld [vmem:[#allocation3 + $0x37] sm:$0xff]
      %v461 = vld [vmem:[#allocation3 + $0x3f] sm:$0xff]
      %v462 = vld [vmem:[#allocation3 + $0x47] sm:$0xff]
      %v463 = vld [vmem:[#allocation3 + $0x4f] sm:$0xff]
      %v464 = vld [vmem:[#allocation3 + $0x57] sm:$0xff]
      %v465 = vld [vmem:[#allocation3 + $0x5f] sm:$0xff]
      %v466 = vadd.f32 %v442, %v454
      %v467 = vadd.f32 %v443, %v455
      %v468 = vadd.f32 %v444, %v456
      %v469 = vadd.f32 %v445, %v457
      %v470 = vadd.f32 %v446, %v458
      %v471 = vadd.f32 %v447, %v459
      %v472 = vadd.f32 %v448, %v460
      %v473 = vadd.f32 %v449, %v461
      %v474 = vadd.f32 %v450, %v462
      %v475 = vadd.f32 %v451, %v463
      %v476 = vadd.f32 %v452, %v464
      %v477 = vadd.f32 %v453, %v465
      %v478 = vmul.f32 %v466, 0.04
      %v479 = vmul.f32 %v467, 0.04
      %v480 = vmul.f32 %v468, 0.04
      %v481 = vmul.f32 %v469, 0.04
      %v482 = vmul.f32 %v470, 0.04
      %v483 = vmul.f32 %v471, 0.04
      %v484 = vmul.f32 %v472, 0.04
      %v485 = vmul.f32 %v473, 0.04
      %v486 = vmul.f32 %v474, 0.04
      %v487 = vmul.f32 %v475, 0.04
      %v488 = vmul.f32 %v476, 0.04
      %v489 = vmul.f32 %v477, 0.04
      %490 = vst.msk [vmem:[%s147] sm:$0xff] %vm153, %v478
      %491 = vst.msk [vmem:[%s147 + $0x8] sm:$0xff] %vm153, %v479
      %492 = vst.msk [vmem:[%s147 + $0x10] sm:$0xff] %vm153, %v480
      %493 = vst.msk [vmem:[%s147 + $0x18] sm:$0xff] %vm153, %v481
      %494 = vst.msk [vmem:[%s147 + $0x20] sm:$0xff] %vm153, %v482
      %495 = vst.msk [vmem:[%s147 + $0x28] sm:$0xff] %vm153, %v483
      %496 = vst.msk [vmem:[%s147 + $0x30] sm:$0xff] %vm153, %v484
      %497 = vst.msk [vmem:[%s147 + $0x38] sm:$0xff] %vm153, %v485
      %498 = vst.msk [vmem:[%s147 + $0x40] sm:$0xff] %vm153, %v486
      %499 = vst.msk [vmem:[%s147 + $0x48] sm:$0xff] %vm153, %v487
      %500 = vst.msk [vmem:[%s147 + $0x50] sm:$0xff] %vm153, %v488
      %501 = vst.msk [vmem:[%s147 + $0x58] sm:$0xff] %vm153, %v489
      %p502 = scmp.lt.s32.totalorder %s16, 1
      %s503 = scalar_select %p502, %s16, 1
      %p504 = scmp.lt.s32.totalorder %s17, 0
      %s505 = scalar_select %p504, %s17, 0
      %s506 = smul.addr %s503, 12
      %s507 = sadd.s32 %s505, %s506
      %s508 = smul.addr %s507, 8
      %s509 = scalar_lea.vmem %s1, %s508
      // Predicated region
      $region25: #{tpu_custom_call.1} parent=23 // pred_check
        %p510 = pneg %p72
      $region26: #{tpu_custom_call.1} parent=23 // pred_check_branch
        %512 = sbr.rel (%p510) target = $region28
      $region27: #{tpu_custom_call.1} parent=23 // pred_region
        _
      $region28: #{tpu_custom_call.1} parent=23 // pred_fallthru
        _
    $region24: #{tpu_custom_call.1} parent=5 // pred_fallthru
      _
    %p513 = scmp.le.s32.totalorder 2, %s7
    // Predicated region
    $region29: #{tpu_custom_call.1} parent=5 // pred_check
      %p514 = pneg %p513
    $region30: #{tpu_custom_call.1} parent=5 // pred_check_branch
      %516 = sbr.rel (%p514) target = $region32
    $region31: #{tpu_custom_call.1} parent=5 // pred_region
      %s517 = ssub.s32 %s7, 2
      // Predicated region
      $region33: #{tpu_custom_call.1} parent=31 // pred_check
        %p518 = pneg %p78
      $region34: #{tpu_custom_call.1} parent=31 // pred_check_branch
        %520 = sbr.rel (%p518) target = $region36
      $region35: #{tpu_custom_call.1} parent=31 // pred_region
        %p521 = scmp.lt.s32.totalorder %s18, 1
        %s522 = scalar_select %p521, %s18, 1
        %p523 = scmp.lt.s32.totalorder %s19, 0
        %s524 = scalar_select %p523, %s19, 0
        %s525 = smul.addr %s522, 12
        %s526 = sadd.s32 %s524, %s525
        %s527 = smul.addr %s526, 8
        %s528 = scalar_lea.vmem %s1, %s527
      $region36: #{tpu_custom_call.1} parent=31 // pred_fallthru
        _
    $region32: #{tpu_custom_call.1} parent=5 // pred_fallthru
      _
  $region6: #{tpu_custom_call.1} parent=0 // loop_footer
    %s11 = sadd.s32 1, %s7
  $region7: #{tpu_custom_call.1} parent=0 // loop_footer_branch
    %6 = sbr.rel target = $region3
  $region8: #{tpu_custom_call.1} parent=0 // loop_exit
    _

</llo_original>
